<compile_context>
chip_gen: v7x
topology: tpu7x:2x2x1
jax: 0.10.0
libtpu: 0.0.40
codegen_flags: <defaults>
</compile_context>

<pallas_src>
import jax
import jax.numpy as jnp
from jax.experimental import pallas as pl
from jax.experimental.pallas import tpu as pltpu

_LANE = 128
_WKEYS = ("Wxi", "Whi", "Wxf", "Whf", "Wxc", "Whc",
          "Wxo", "Who", "Wci", "Wcf", "Wco")


def _sigmoid(z):
    # 1 EUP op (tanh) instead of exp + reciprocal; exact identity.
    return 0.5 * jnp.tanh(0.5 * z) + 0.5


def _lstm_cell_kernel(w_ref, x_ref, h_ref, c_ref, ch_ref, cc_ref):
    # w_ref: (11, TS, 128)   -- all gate weights for this spatial tile
    # x/h/c_ref: (1, TS, 128) -- one batch element's tile
    x = x_ref[0, :, :]
    h = h_ref[0, :, :]
    c = c_ref[0, :, :]

    wxi = w_ref[0]; whi = w_ref[1]
    wxf = w_ref[2]; whf = w_ref[3]
    wxc = w_ref[4]; whc = w_ref[5]
    wxo = w_ref[6]; who = w_ref[7]
    wci = w_ref[8]; wcf = w_ref[9]; wco = w_ref[10]

    ci = _sigmoid(wxi * x + whi * h + c * wci)
    cf = _sigmoid(wxf * x + whf * h + c * wcf)
    cc = cf * c + ci * jnp.tanh(wxc * x + whc * h)
    co = _sigmoid(wxo * x + who * h + cc * wco)
    ch = co * jnp.tanh(cc)

    ch_ref[0, :, :] = ch.astype(ch_ref.dtype)
    cc_ref[0, :, :] = cc.astype(cc_ref.dtype)


def _pick_tile_rows(ns, max_rows=1024):
    """Largest multiple of 8 that divides ns (capped); else full extent."""
    cap = min(ns, max_rows)
    start = (cap // 8) * 8
    for cand in range(start, 0, -8):
        if ns % cand == 0:
            return cand
    return ns  # full extent is always a legal block size


def lstm_cell_forward(weights, x, h, c, *, max_tile_rows=1024):
    """weights: dict of 11 arrays (1, C, H, W); x/h/c: (B, C, H, W)."""
    B, C, H, W = x.shape
    N = C * H * W
    assert N % _LANE == 0, "C*H*W must be a multiple of 128 for this layout"
    NS = N // _LANE                      # rows of 128 lanes per batch element
    TS = _pick_tile_rows(NS, max_tile_rows)
    NT = NS // TS                        # spatial tiles

    # Parameter pre-packing (done once per weight set): 11 -> 1 array.
    w_all = jnp.stack([weights[k].reshape(NS, _LANE) for k in _WKEYS])  # (11, NS, 128)

    # Position-preserving flatten (elementwise op => any flatten is legal).
    x_f = x.reshape(B, NS, _LANE)
    h_f = h.reshape(B, NS, _LANE)
    c_f = c.reshape(B, NS, _LANE)

    # grid = (spatial_tile, batch): batch innermost so the weight block index
    # is constant along the inner axis (fetched once per spatial tile).
    w_spec = pl.BlockSpec((11, TS, _LANE), lambda t, b: (0, t, 0))
    s_spec = pl.BlockSpec((1, TS, _LANE), lambda t, b: (b, t, 0))

    grid_spec = pltpu.PrefetchScalarGridSpec(
        num_scalar_prefetch=0,
        grid=(NT, B),
        in_specs=[w_spec, s_spec, s_spec, s_spec],
        out_specs=[s_spec, s_spec],
    )

    ch_f, cc_f = pl.pallas_call(
        _lstm_cell_kernel,
        out_shape=(
            jax.ShapeDtypeStruct((B, NS, _LANE), x.dtype),
            jax.ShapeDtypeStruct((B, NS, _LANE), x.dtype),
        ),
        grid_spec=grid_spec,
        compiler_params=pltpu.CompilerParams(
            dimension_semantics=("parallel", "arbitrary"),
            vmem_limit_bytes=32 * 1024 * 1024,
        ),
    )(w_all, x_f, h_f, c_f)

    return ch_f.reshape(B, C, H, W), cc_f.reshape(B, C, H, W)


def _reference_forward(weights, x, h, c):
    ci = jax.nn.sigmoid(weights["Wxi"] * x + weights["Whi"] * h + c * weights["Wci"])
    cf = jax.nn.sigmoid(weights["Wxf"] * x + weights["Whf"] * h + c * weights["Wcf"])
    cc = cf * c + ci * jnp.tanh(weights["Wxc"] * x + weights["Whc"] * h)
    co = jax.nn.sigmoid(weights["Wxo"] * x + weights["Who"] * h + cc * weights["Wco"])
    ch = co * jnp.tanh(cc)
    return ch, cc


if __name__ == "__main__":
    # Small shapes consistent with the forward's broadcasting semantics.
    # (The original hardcodes 480x640 spatial; we use 16x16 here.)
    B, C, H, W = 2, 4, 16, 16          # hidden_channels must be even
    dtype = jnp.float32                 # TODO(synk): PyTorch uses float64; TPU Pallas has no f64 vector path.

    key = jax.random.PRNGKey(0)
    keys = jax.random.split(key, len(_WKEYS) + 3)
    weights = {
        name: jax.random.normal(k, (1, C, H, W), dtype=dtype) * 0.1
        for name, k in zip(_WKEYS, keys[:len(_WKEYS)])
    }
    x = jax.random.normal(keys[-3], (B, C, H, W), dtype=dtype)
    h = jax.random.normal(keys[-2], (B, C, H, W), dtype=dtype)
    c = jax.random.normal(keys[-1], (B, C, H, W), dtype=dtype)

    ch, cc = lstm_cell_forward(weights, x, h, c)
    ch = jax.block_until_ready(ch)
    cc = jax.block_until_ready(cc)

    ch_ref, cc_ref = _reference_forward(weights, x, h, c)
    assert jnp.allclose(ch, ch_ref, atol=1e-5, rtol=1e-5)
    assert jnp.allclose(cc, cc_ref, atol=1e-5, rtol=1e-5)

    print("KERNEL_OK")
</pallas_src>

<mosaic_0001>
module attributes {stable_mosaic.version = 11 : i64} {
  func.func @_lstm_cell_kernel(%arg0: i32, %arg1: i32, %arg2: memref<11x8x128xf32, #tpu.memory_space<vmem>>, %arg3: memref<1x8x128xf32, #tpu.memory_space<vmem>>, %arg4: memref<1x8x128xf32, #tpu.memory_space<vmem>>, %arg5: memref<1x8x128xf32, #tpu.memory_space<vmem>>, %arg6: memref<1x8x128xf32, #tpu.memory_space<vmem>>, %arg7: memref<1x8x128xf32, #tpu.memory_space<vmem>>) attributes {dimension_semantics = [#tpu.dimension_semantics<parallel>, #tpu.dimension_semantics<arbitrary>], iteration_bounds = array<i64: 1, 2>, scalar_prefetch = 0 : i64, scratch_operands = 0 : i64, tpu.core_type = #tpu.core_type<tc>, window_params = [{transform_indices = @transform_0, window_bounds = array<i64: 11, 8, 128>}, {transform_indices = @transform_1, window_bounds = array<i64: 1, 8, 128>}, {transform_indices = @transform_2, window_bounds = array<i64: 1, 8, 128>}, {transform_indices = @transform_3, window_bounds = array<i64: 1, 8, 128>}, {transform_indices = @transform_4, window_bounds = array<i64: 1, 8, 128>}, {transform_indices = @transform_5, window_bounds = array<i64: 1, 8, 128>}]} {
    %c0 = arith.constant 0 : index
    %c0_0 = arith.constant 0 : index
    %c0_1 = arith.constant 0 : index
    %0 = vector.load %arg3[%c0, %c0_0, %c0_1] : memref<1x8x128xf32, #tpu.memory_space<vmem>>, vector<1x8x128xf32>
    %1 = vector.shape_cast %0 : vector<1x8x128xf32> to vector<8x128xf32>
    %c0_2 = arith.constant 0 : index
    %c0_3 = arith.constant 0 : index
    %c0_4 = arith.constant 0 : index
    %2 = vector.load %arg4[%c0_2, %c0_3, %c0_4] : memref<1x8x128xf32, #tpu.memory_space<vmem>>, vector<1x8x128xf32>
    %3 = vector.shape_cast %2 : vector<1x8x128xf32> to vector<8x128xf32>
    %c0_5 = arith.constant 0 : index
    %c0_6 = arith.constant 0 : index
    %c0_7 = arith.constant 0 : index
    %4 = vector.load %arg5[%c0_5, %c0_6, %c0_7] : memref<1x8x128xf32, #tpu.memory_space<vmem>>, vector<1x8x128xf32>
    %5 = vector.shape_cast %4 : vector<1x8x128xf32> to vector<8x128xf32>
    %c0_8 = arith.constant 0 : index
    %c0_9 = arith.constant 0 : index
    %c0_10 = arith.constant 0 : index
    %6 = vector.load %arg2[%c0_8, %c0_9, %c0_10] : memref<11x8x128xf32, #tpu.memory_space<vmem>>, vector<1x8x128xf32>
    %7 = vector.shape_cast %6 : vector<1x8x128xf32> to vector<8x128xf32>
    %c1 = arith.constant 1 : index
    %c0_11 = arith.constant 0 : index
    %c0_12 = arith.constant 0 : index
    %8 = vector.load %arg2[%c1, %c0_11, %c0_12] : memref<11x8x128xf32, #tpu.memory_space<vmem>>, vector<1x8x128xf32>
    %9 = vector.shape_cast %8 : vector<1x8x128xf32> to vector<8x128xf32>
    %c2 = arith.constant 2 : index
    %c0_13 = arith.constant 0 : index
    %c0_14 = arith.constant 0 : index
    %10 = vector.load %arg2[%c2, %c0_13, %c0_14] : memref<11x8x128xf32, #tpu.memory_space<vmem>>, vector<1x8x128xf32>
    %11 = vector.shape_cast %10 : vector<1x8x128xf32> to vector<8x128xf32>
    %c3 = arith.constant 3 : index
    %c0_15 = arith.constant 0 : index
    %c0_16 = arith.constant 0 : index
    %12 = vector.load %arg2[%c3, %c0_15, %c0_16] : memref<11x8x128xf32, #tpu.memory_space<vmem>>, vector<1x8x128xf32>
    %13 = vector.shape_cast %12 : vector<1x8x128xf32> to vector<8x128xf32>
    %c4 = arith.constant 4 : index
    %c0_17 = arith.constant 0 : index
    %c0_18 = arith.constant 0 : index
    %14 = vector.load %arg2[%c4, %c0_17, %c0_18] : memref<11x8x128xf32, #tpu.memory_space<vmem>>, vector<1x8x128xf32>
    %15 = vector.shape_cast %14 : vector<1x8x128xf32> to vector<8x128xf32>
    %c5 = arith.constant 5 : index
    %c0_19 = arith.constant 0 : index
    %c0_20 = arith.constant 0 : index
    %16 = vector.load %arg2[%c5, %c0_19, %c0_20] : memref<11x8x128xf32, #tpu.memory_space<vmem>>, vector<1x8x128xf32>
    %17 = vector.shape_cast %16 : vector<1x8x128xf32> to vector<8x128xf32>
    %c6 = arith.constant 6 : index
    %c0_21 = arith.constant 0 : index
    %c0_22 = arith.constant 0 : index
    %18 = vector.load %arg2[%c6, %c0_21, %c0_22] : memref<11x8x128xf32, #tpu.memory_space<vmem>>, vector<1x8x128xf32>
    %19 = vector.shape_cast %18 : vector<1x8x128xf32> to vector<8x128xf32>
    %c7 = arith.constant 7 : index
    %c0_23 = arith.constant 0 : index
    %c0_24 = arith.constant 0 : index
    %20 = vector.load %arg2[%c7, %c0_23, %c0_24] : memref<11x8x128xf32, #tpu.memory_space<vmem>>, vector<1x8x128xf32>
    %21 = vector.shape_cast %20 : vector<1x8x128xf32> to vector<8x128xf32>
    %c8 = arith.constant 8 : index
    %c0_25 = arith.constant 0 : index
    %c0_26 = arith.constant 0 : index
    %22 = vector.load %arg2[%c8, %c0_25, %c0_26] : memref<11x8x128xf32, #tpu.memory_space<vmem>>, vector<1x8x128xf32>
    %23 = vector.shape_cast %22 : vector<1x8x128xf32> to vector<8x128xf32>
    %c9 = arith.constant 9 : index
    %c0_27 = arith.constant 0 : index
    %c0_28 = arith.constant 0 : index
    %24 = vector.load %arg2[%c9, %c0_27, %c0_28] : memref<11x8x128xf32, #tpu.memory_space<vmem>>, vector<1x8x128xf32>
    %25 = vector.shape_cast %24 : vector<1x8x128xf32> to vector<8x128xf32>
    %c10 = arith.constant 10 : index
    %c0_29 = arith.constant 0 : index
    %c0_30 = arith.constant 0 : index
    %26 = vector.load %arg2[%c10, %c0_29, %c0_30] : memref<11x8x128xf32, #tpu.memory_space<vmem>>, vector<1x8x128xf32>
    %27 = vector.shape_cast %26 : vector<1x8x128xf32> to vector<8x128xf32>
    %28 = arith.mulf %7, %1 : vector<8x128xf32>
    %29 = arith.mulf %9, %3 : vector<8x128xf32>
    %30 = arith.addf %28, %29 : vector<8x128xf32>
    %31 = arith.mulf %5, %23 : vector<8x128xf32>
    %32 = arith.addf %30, %31 : vector<8x128xf32>
    %cst = arith.constant 5.000000e-01 : f32
    %33 = vector.broadcast %cst : f32 to vector<8x128xf32>
    %34 = arith.mulf %33, %32 : vector<8x128xf32>
    %35 = math.tanh %34 : vector<8x128xf32>
    %cst_31 = arith.constant 5.000000e-01 : f32
    %36 = vector.broadcast %cst_31 : f32 to vector<8x128xf32>
    %37 = arith.mulf %36, %35 : vector<8x128xf32>
    %cst_32 = arith.constant 5.000000e-01 : f32
    %38 = vector.broadcast %cst_32 : f32 to vector<8x128xf32>
    %39 = arith.addf %37, %38 : vector<8x128xf32>
    %40 = arith.mulf %11, %1 : vector<8x128xf32>
    %41 = arith.mulf %13, %3 : vector<8x128xf32>
    %42 = arith.addf %40, %41 : vector<8x128xf32>
    %43 = arith.mulf %5, %25 : vector<8x128xf32>
    %44 = arith.addf %42, %43 : vector<8x128xf32>
    %cst_33 = arith.constant 5.000000e-01 : f32
    %45 = vector.broadcast %cst_33 : f32 to vector<8x128xf32>
    %46 = arith.mulf %45, %44 : vector<8x128xf32>
    %47 = math.tanh %46 : vector<8x128xf32>
    %cst_34 = arith.constant 5.000000e-01 : f32
    %48 = vector.broadcast %cst_34 : f32 to vector<8x128xf32>
    %49 = arith.mulf %48, %47 : vector<8x128xf32>
    %cst_35 = arith.constant 5.000000e-01 : f32
    %50 = vector.broadcast %cst_35 : f32 to vector<8x128xf32>
    %51 = arith.addf %49, %50 : vector<8x128xf32>
    %52 = arith.mulf %51, %5 : vector<8x128xf32>
    %53 = arith.mulf %15, %1 : vector<8x128xf32>
    %54 = arith.mulf %17, %3 : vector<8x128xf32>
    %55 = arith.addf %53, %54 : vector<8x128xf32>
    %56 = math.tanh %55 : vector<8x128xf32>
    %57 = arith.mulf %39, %56 : vector<8x128xf32>
    %58 = arith.addf %52, %57 : vector<8x128xf32>
    %59 = arith.mulf %19, %1 : vector<8x128xf32>
    %60 = arith.mulf %21, %3 : vector<8x128xf32>
    %61 = arith.addf %59, %60 : vector<8x128xf32>
    %62 = arith.mulf %58, %27 : vector<8x128xf32>
    %63 = arith.addf %61, %62 : vector<8x128xf32>
    %cst_36 = arith.constant 5.000000e-01 : f32
    %64 = vector.broadcast %cst_36 : f32 to vector<8x128xf32>
    %65 = arith.mulf %64, %63 : vector<8x128xf32>
    %66 = math.tanh %65 : vector<8x128xf32>
    %cst_37 = arith.constant 5.000000e-01 : f32
    %67 = vector.broadcast %cst_37 : f32 to vector<8x128xf32>
    %68 = arith.mulf %67, %66 : vector<8x128xf32>
    %cst_38 = arith.constant 5.000000e-01 : f32
    %69 = vector.broadcast %cst_38 : f32 to vector<8x128xf32>
    %70 = arith.addf %68, %69 : vector<8x128xf32>
    %71 = math.tanh %58 : vector<8x128xf32>
    %72 = arith.mulf %70, %71 : vector<8x128xf32>
    %c0_39 = arith.constant 0 : index
    %c0_40 = arith.constant 0 : index
    %c0_41 = arith.constant 0 : index
    %73 = vector.load %arg6[%c0_39, %c0_40, %c0_41] : memref<1x8x128xf32, #tpu.memory_space<vmem>>, vector<1x8x128xf32>
    %74 = vector.shape_cast %73 : vector<1x8x128xf32> to vector<8x128xf32>
    %75 = vector.shape_cast %72 : vector<8x128xf32> to vector<1x8x128xf32>
    tpu.vector_store %arg6[%c0_39, %c0_40, %c0_41], %75 {strides = array<i32>} : memref<1x8x128xf32, #tpu.memory_space<vmem>>, vector<1x8x128xf32>,
    %c0_42 = arith.constant 0 : index
    %c0_43 = arith.constant 0 : index
    %c0_44 = arith.constant 0 : index
    %76 = vector.load %arg7[%c0_42, %c0_43, %c0_44] : memref<1x8x128xf32, #tpu.memory_space<vmem>>, vector<1x8x128xf32>
    %77 = vector.shape_cast %76 : vector<1x8x128xf32> to vector<8x128xf32>
    %78 = vector.shape_cast %58 : vector<8x128xf32> to vector<1x8x128xf32>
    tpu.vector_store %arg7[%c0_42, %c0_43, %c0_44], %78 {strides = array<i32>} : memref<1x8x128xf32, #tpu.memory_space<vmem>>, vector<1x8x128xf32>,
    return
  }
  func.func @transform_0(%arg0: i32, %arg1: i32) -> (i32, i32, i32) {
    %c0_i32 = arith.constant 0 : i32
    %c0_i32_0 = arith.constant 0 : i32
    %c0_i32_1 = arith.constant 0 : i32
    return %c0_i32, %arg0, %c0_i32_0 : i32, i32, i32
  }
  func.func @transform_1(%arg0: i32, %arg1: i32) -> (i32, i32, i32) {
    %c0_i32 = arith.constant 0 : i32
    %c0_i32_0 = arith.constant 0 : i32
    return %arg1, %arg0, %c0_i32 : i32, i32, i32
  }
  func.func @transform_2(%arg0: i32, %arg1: i32) -> (i32, i32, i32) {
    %c0_i32 = arith.constant 0 : i32
    %c0_i32_0 = arith.constant 0 : i32
    return %arg1, %arg0, %c0_i32 : i32, i32, i32
  }
  func.func @transform_3(%arg0: i32, %arg1: i32) -> (i32, i32, i32) {
    %c0_i32 = arith.constant 0 : i32
    %c0_i32_0 = arith.constant 0 : i32
    return %arg1, %arg0, %c0_i32 : i32, i32, i32
  }
  func.func @transform_4(%arg0: i32, %arg1: i32) -> (i32, i32, i32) {
    %c0_i32 = arith.constant 0 : i32
    %c0_i32_0 = arith.constant 0 : i32
    return %arg1, %arg0, %c0_i32 : i32, i32, i32
  }
  func.func @transform_5(%arg0: i32, %arg1: i32) -> (i32, i32, i32) {
    %c0_i32 = arith.constant 0 : i32
    %c0_i32_0 = arith.constant 0 : i32
    return %arg1, %arg0, %c0_i32 : i32, i32, i32
  }
}

</mosaic_0001>

<llo_original>
// kernel: tpu_custom_call.1
$region0: #{tpu_custom_call.1}
  #allocation0 [shape = 'u32[]', space=smem, size = 0x4, offset = 0x4, fixed_abs, tag = 'smem constant byte address 0x4 - core index']
  #allocation1 [shape = 'u32[144,128]{1,0:T(1,128)}', space=vmem, size = 0x12000, scoped, tag = 'internal scratch']
  %s0 = inlined_call_operand.hbm [shape: f32[11,8,128], index: 0, kind: input, shape index: {}]
  %s1 = inlined_call_operand.hbm [shape: f32[2,8,128], index: 1, kind: input, shape index: {}]
  %s2 = inlined_call_operand.hbm [shape: f32[2,8,128], index: 2, kind: input, shape index: {}]
  %s3 = inlined_call_operand.hbm [shape: f32[2,8,128], index: 3, kind: input, shape index: {}]
  %s4 = inlined_call_operand.hbm [shape: f32[2,8,128], index: 4, kind: output, shape index: {0}]
  %s5 = inlined_call_operand.hbm [shape: f32[2,8,128], index: 5, kind: output, shape index: {1}]
  %6 = xla_tuple %s4, %s5
  %s7 = sld [smem:[#allocation0]]
  $region73: #{tpu_custom_call.1} parent=0
    _
  %s9 = ssub.s32 1, %s7
  %s10 = scalar_select 0, %s9, %s7
  $region1: #{tpu_custom_call.1} parent=0
    #allocation2 [shape = 'u8[45056]{0}', space=vmem, size = 0xb000, scoped, tag = 'input window, operand 0, single buffered']
    #allocation3 [shape = 's32[2]{0}', space=sflag, size = 0x8, scoped, tag = 'scoped memory for tpu_custom_call.1']
    #allocation4 [shape = 's32[2]{0}', space=sflag, size = 0x8, scoped, tag = 'scoped memory for tpu_custom_call.1']
    #allocation5 [shape = 'u8[8192]{0}', space=vmem, size = 0x2000, scoped, tag = 'input window, operand 1']
    #allocation6 [shape = 's32[2]{0}', space=sflag, size = 0x8, scoped, tag = 'scoped memory for tpu_custom_call.1']
    #allocation7 [shape = 'u8[8192]{0}', space=vmem, size = 0x2000, scoped, tag = 'input window, operand 2']
    #allocation8 [shape = 'u8[8192]{0}', space=vmem, size = 0x2000, scoped, tag = 'input window, operand 3']
    #allocation9 [shape = 's32[2]{0}', space=sflag, size = 0x8, scoped, tag = 'scoped memory for tpu_custom_call.1']
    #allocation10 [shape = 'u8[8192]{0}', space=vmem, size = 0x2000, scoped, tag = 'output window, operand 0']
    #allocation11 [shape = 'u8[8192]{0}', space=vmem, size = 0x2000, scoped, tag = 'output window, operand 1']
    #allocation12 [shape = 's32[2]{0}', space=sflag, size = 0x8, scoped, tag = 'scoped memory for tpu_custom_call.1']
    %11 = vsyncpa [#allocation3], 0
    %12 = vsyncpa [#allocation6], 0
    %s13 = scalar_lea.sflag [#allocation6], 1
    %14 = vsyncpa %s13, 0
    %15 = vsyncpa [#allocation9], 0
    %s16 = scalar_lea.sflag [#allocation9], 1
    %17 = vsyncpa %s16, 0
    %18 = vsyncpa [#allocation4], 0
    %s19 = scalar_lea.sflag [#allocation4], 1
    %20 = vsyncpa %s19, 0
    %21 = vsyncpa [#allocation12], 0
    %s22 = scalar_lea.sflag [#allocation12], 1
    %23 = vsyncpa %s22, 0
    loop: start=0, step=1, limit=4
    $region2: #{tpu_custom_call.1} parent=1 // loop_pre_header
      _
    $region3: #{tpu_custom_call.1} parent=1 // loop_header
      %s25 = sphi 0, %s29
      %p26 = scmp.ge.s32.totalorder %s25, 4
      %s32 = sphi 0, %s44
      %s33 = sphi 0, %s40
      %s34 = sphi 0, %s32
      %s35 = sphi 0, %s33
      %s36 = sphi 0, %s34
      %s37 = sphi 0, %s35
      %s47 = sphi 0, %s49
      %s50 = sphi 0, %s47
      %s51 = sphi 0, %s50
      %s67 = sphi 0, %s51
      %s75 = sphi 0, %s77
      %s78 = sphi 0, %s75
      %s79 = sphi 0, %s78
      %s95 = sphi 0, %s79
      %s103 = sphi 0, %s105
      %s106 = sphi 0, %s103
      %s107 = sphi 0, %s106
      %s123 = sphi 0, %s107
      %s131 = sphi 0, %s133
      %s134 = sphi 0, %s131
      %s135 = sphi 0, %s134
      %s151 = sphi 0, %s135
      %s159 = sphi 0, %s161
      %s162 = sphi 0, %s159
      %s163 = sphi 0, %s162
      %s179 = sphi 0, %s163
      %s187 = sphi 0, %s189
      %s190 = sphi 0, %s187
      %s191 = sphi 0, %s190
      %s207 = sphi 0, %s191
    $region4: #{tpu_custom_call.1} parent=1 // loop_header_branch
      %28 = sbr.rel (%p26) target = $region8
    $region5: #{tpu_custom_call.1} parent=1 // loop_body
      %s30 = ssub.s32 %s25, 1
      %s31 = ssub.s32 %s25, 2
      %s38 = sadd.s32 1, %s33
      %p39 = scmp.ge.s32.totalorder %s38, 2
      %s40 = scalar_select %p39, 0, %s38
      %s41 = sadd.s32 1, %s32
      %s42 = scalar_select %p39, %s41, %s32
      %p43 = scmp.ge.s32.totalorder %s42, 1
      %s44 = scalar_select %p43, 0, %s42
      %s45 = ssub.s32 %s32, %s44
      %p46 = scmp.eq.s32.totalorder %s45, 0
      %s48 = sadd.s32 %s47, 1
      %s49 = scalar_select %p46, %s47, %s48
      %p52 = pneg %p46
      %p53 = scmp.eq.s32.totalorder %s25, 1
      %p54 = por %p52, %p53
      %p55 = scmp.ne.s32.totalorder %s47, %s50
      %p56 = scmp.eq.s32.totalorder %s25, 0
      %p57 = por %p55, %p56
      %p58 = scmp.ne.s32.totalorder %s47, %s50
      %p59 = scmp.eq.s32.totalorder %s30, 1
      %p60 = por %p58, %p59
      %p61 = scmp.ne.s32.totalorder %s50, %s51
      %p62 = scmp.eq.s32.totalorder %s30, 0
      %p63 = por %p61, %p62
      %p64 = scmp.ne.s32.totalorder %s50, %s51
      %p65 = scmp.eq.s32.totalorder %s31, 1
      %p66 = por %p64, %p65
      %p68 = scmp.ne.s32.totalorder %s51, %s67
      %p69 = scmp.eq.s32.totalorder %s31, 0
      %p70 = por %p68, %p69
      %s71 = ssub.s32 %s33, %s40
      %s72 = ssub.s32 %s32, %s44
      %s73 = sor.u32 %s71, %s72
      %p74 = scmp.eq.s32.totalorder %s73, 0
      %s76 = sadd.s32 %s75, 1
      %s77 = scalar_select %p74, %s75, %s76
      %p80 = pneg %p74
      %p81 = scmp.eq.s32.totalorder %s25, 1
      %p82 = por %p80, %p81
      %p83 = scmp.ne.s32.totalorder %s75, %s78
      %p84 = scmp.eq.s32.totalorder %s25, 0
      %p85 = por %p83, %p84
      %p86 = scmp.ne.s32.totalorder %s75, %s78
      %p87 = scmp.eq.s32.totalorder %s30, 1
      %p88 = por %p86, %p87
      %p89 = scmp.ne.s32.totalorder %s78, %s79
      %p90 = scmp.eq.s32.totalorder %s30, 0
      %p91 = por %p89, %p90
      %p92 = scmp.ne.s32.totalorder %s78, %s79
      %p93 = scmp.eq.s32.totalorder %s31, 1
      %p94 = por %p92, %p93
      %p96 = scmp.ne.s32.totalorder %s79, %s95
      %p97 = scmp.eq.s32.totalorder %s31, 0
      %p98 = por %p96, %p97
      %s99 = ssub.s32 %s33, %s40
      %s100 = ssub.s32 %s32, %s44
      %s101 = sor.u32 %s99, %s100
      %p102 = scmp.eq.s32.totalorder %s101, 0
      %s104 = sadd.s32 %s103, 1
      %s105 = scalar_select %p102, %s103, %s104
      %p108 = pneg %p102
      %p109 = scmp.eq.s32.totalorder %s25, 1
      %p110 = por %p108, %p109
      %p111 = scmp.ne.s32.totalorder %s103, %s106
      %p112 = scmp.eq.s32.totalorder %s25, 0
      %p113 = por %p111, %p112
      %p114 = scmp.ne.s32.totalorder %s103, %s106
      %p115 = scmp.eq.s32.totalorder %s30, 1
      %p116 = por %p114, %p115
      %p117 = scmp.ne.s32.totalorder %s106, %s107
      %p118 = scmp.eq.s32.totalorder %s30, 0
      %p119 = por %p117, %p118
      %p120 = scmp.ne.s32.totalorder %s106, %s107
      %p121 = scmp.eq.s32.totalorder %s31, 1
      %p122 = por %p120, %p121
      %p124 = scmp.ne.s32.totalorder %s107, %s123
      %p125 = scmp.eq.s32.totalorder %s31, 0
      %p126 = por %p124, %p125
      %s127 = ssub.s32 %s33, %s40
      %s128 = ssub.s32 %s32, %s44
      %s129 = sor.u32 %s127, %s128
      %p130 = scmp.eq.s32.totalorder %s129, 0
      %s132 = sadd.s32 %s131, 1
      %s133 = scalar_select %p130, %s131, %s132
      %p136 = pneg %p130
      %p137 = scmp.eq.s32.totalorder %s25, 1
      %p138 = por %p136, %p137
      %p139 = scmp.ne.s32.totalorder %s131, %s134
      %p140 = scmp.eq.s32.totalorder %s25, 0
      %p141 = por %p139, %p140
      %p142 = scmp.ne.s32.totalorder %s131, %s134
      %p143 = scmp.eq.s32.totalorder %s30, 1
      %p144 = por %p142, %p143
      %p145 = scmp.ne.s32.totalorder %s134, %s135
      %p146 = scmp.eq.s32.totalorder %s30, 0
      %p147 = por %p145, %p146
      %p148 = scmp.ne.s32.totalorder %s134, %s135
      %p149 = scmp.eq.s32.totalorder %s31, 1
      %p150 = por %p148, %p149
      %p152 = scmp.ne.s32.totalorder %s135, %s151
      %p153 = scmp.eq.s32.totalorder %s31, 0
      %p154 = por %p152, %p153
      %s155 = ssub.s32 %s33, %s40
      %s156 = ssub.s32 %s32, %s44
      %s157 = sor.u32 %s155, %s156
      %p158 = scmp.eq.s32.totalorder %s157, 0
      %s160 = sadd.s32 %s159, 1
      %s161 = scalar_select %p158, %s159, %s160
      %p164 = pneg %p158
      %p165 = scmp.eq.s32.totalorder %s25, 1
      %p166 = por %p164, %p165
      %p167 = scmp.ne.s32.totalorder %s159, %s162
      %p168 = scmp.eq.s32.totalorder %s25, 0
      %p169 = por %p167, %p168
      %p170 = scmp.ne.s32.totalorder %s159, %s162
      %p171 = scmp.eq.s32.totalorder %s30, 1
      %p172 = por %p170, %p171
      %p173 = scmp.ne.s32.totalorder %s162, %s163
      %p174 = scmp.eq.s32.totalorder %s30, 0
      %p175 = por %p173, %p174
      %p176 = scmp.ne.s32.totalorder %s162, %s163
      %p177 = scmp.eq.s32.totalorder %s31, 1
      %p178 = por %p176, %p177
      %p180 = scmp.ne.s32.totalorder %s163, %s179
      %p181 = scmp.eq.s32.totalorder %s31, 0
      %p182 = por %p180, %p181
      %s183 = ssub.s32 %s33, %s40
      %s184 = ssub.s32 %s32, %s44
      %s185 = sor.u32 %s183, %s184
      %p186 = scmp.eq.s32.totalorder %s185, 0
      %s188 = sadd.s32 %s187, 1
      %s189 = scalar_select %p186, %s187, %s188
      %p192 = pneg %p186
      %p193 = scmp.eq.s32.totalorder %s25, 1
      %p194 = por %p192, %p193
      %p195 = scmp.ne.s32.totalorder %s187, %s190
      %p196 = scmp.eq.s32.totalorder %s25, 0
      %p197 = por %p195, %p196
      %p198 = scmp.ne.s32.totalorder %s187, %s190
      %p199 = scmp.eq.s32.totalorder %s30, 1
      %p200 = por %p198, %p199
      %p201 = scmp.ne.s32.totalorder %s190, %s191
      %p202 = scmp.eq.s32.totalorder %s30, 0
      %p203 = por %p201, %p202
      %p204 = scmp.ne.s32.totalorder %s190, %s191
      %p205 = scmp.eq.s32.totalorder %s31, 1
      %p206 = por %p204, %p205
      %p208 = scmp.ne.s32.totalorder %s191, %s207
      %p209 = scmp.eq.s32.totalorder %s31, 0
      %p210 = por %p208, %p209
      %p211 = scmp.le.s32.totalorder 1, %s25
      %p212 = scmp.lt.s32.totalorder %s25, 3
      %p213 = pnand %p211, %p212
      %p214 = pneg %p213
      // Predicated region
      $region9: #{tpu_custom_call.1} parent=5 // pred_check
        _
      $region10: #{tpu_custom_call.1} parent=5 // pred_check_branch
        %216 = sbr.rel (%p213) target = $region12
      $region11: #{tpu_custom_call.1} parent=5 // pred_region
        %s217 = ssub.s32 %s25, 1
        // Predicated region
        $region13: #{tpu_custom_call.1} parent=11 // pred_check
          %p218 = pneg %p63
        $region14: #{tpu_custom_call.1} parent=11 // pred_check_branch
          %220 = sbr.rel (%p218) target = $region16
        $region15: #{tpu_custom_call.1} parent=11 // pred_region
          %s222 = ssub.s32 1408, 1408
          %223 = vsyncadd [#allocation3], %s222
          %s224 = smul.addr %s34, 128
          %s225 = scalar_lea.hbm %s0, %s224
          %s226 = sshll.u32 [#allocation2], 4
          %s227 = int_to_ptr.vmem [resolvable:$true] %s226
          %232 = dma.hbm_to_vmem [thread:$0]  %s225, 1408, %s227, [#allocation3], 128, 128, 8
        $region16: #{tpu_custom_call.1} parent=11 // pred_fallthru
          _
      $region12: #{tpu_custom_call.1} parent=5 // pred_fallthru
        _
      %p233 = scmp.lt.s32.totalorder %s25, 2
      // Predicated region
      $region17: #{tpu_custom_call.1} parent=5 // pred_check
        %p234 = pneg %p233
      $region18: #{tpu_custom_call.1} parent=5 // pred_check_branch
        %236 = sbr.rel (%p234) target = $region20
      $region19: #{tpu_custom_call.1} parent=5 // pred_region
        // Predicated region
        $region21: #{tpu_custom_call.1} parent=19 // pred_check
          %p237 = pneg %p85
        $region22: #{tpu_custom_call.1} parent=19 // pred_check_branch
          %239 = sbr.rel (%p237) target = $region24
        $region23: #{tpu_custom_call.1} parent=19 // pred_region
          %s240 = sand.u32 %s25, 1
          %s241 = scalar_lea.sflag [#allocation6], %s240
          %s242 = sand.u32 %s75, 1
          %s243 = smul.addr %s242, 8
          %s244 = scalar_lea.vmem [#allocation5], %s243
          %s246 = ssub.s32 128, 128
          %247 = vsyncadd %s241, %s246
          %s248 = sadd.s32 %s32, %s33
          %s249 = smul.addr %s248, 128
          %s250 = scalar_lea.hbm %s1, %s249
          %s252 = sshll.u32 %s244, 4
          %s253 = int_to_ptr.vmem [resolvable:$true] %s252
          %255 = dma.hbm_to_vmem [thread:$0]  %s250, 128, %s253, %s241
        $region24: #{tpu_custom_call.1} parent=19 // pred_fallthru
          _
        // Predicated region
        $region25: #{tpu_custom_call.1} parent=19 // pred_check
          %p256 = pneg %p113
        $region26: #{tpu_custom_call.1} parent=19 // pred_check_branch
          %258 = sbr.rel (%p256) target = $region28
        $region27: #{tpu_custom_call.1} parent=19 // pred_region
          %s259 = sand.u32 %s25, 1
          %s260 = scalar_lea.sflag [#allocation6], %s259
          %s261 = sand.u32 %s103, 1
          %s262 = smul.addr %s261, 8
          %s263 = scalar_lea.vmem [#allocation7], %s262
          %s265 = ssub.s32 128, 128
          %266 = vsyncadd %s260, %s265
          %s267 = sadd.s32 %s32, %s33
          %s268 = smul.addr %s267, 128
          %s269 = scalar_lea.hbm %s2, %s268
          %s271 = sshll.u32 %s263, 4
          %s272 = int_to_ptr.vmem [resolvable:$true] %s271
          %274 = dma.hbm_to_vmem [thread:$0]  %s269, 128, %s272, %s260
        $region28: #{tpu_custom_call.1} parent=19 // pred_fallthru
          _
        // Predicated region
        $region29: #{tpu_custom_call.1} parent=19 // pred_check
          %p275 = pneg %p141
        $region30: #{tpu_custom_call.1} parent=19 // pred_check_branch
          %277 = sbr.rel (%p275) target = $region32
        $region31: #{tpu_custom_call.1} parent=19 // pred_region
          %s278 = sand.u32 %s131, 1
          %s279 = scalar_lea.sflag [#allocation9], %s278
          %s280 = sand.u32 %s131, 1
          %s281 = smul.addr %s280, 8
          %s282 = scalar_lea.vmem [#allocation8], %s281
          %s284 = ssub.s32 128, 128
          %285 = vsyncadd %s279, %s284
          %s286 = sadd.s32 %s32, %s33
          %s287 = smul.addr %s286, 128
          %s288 = scalar_lea.hbm %s3, %s287
          %s290 = sshll.u32 %s282, 4
          %s291 = int_to_ptr.vmem [resolvable:$true] %s290
          %293 = dma.hbm_to_vmem [thread:$0]  %s288, 128, %s291, %s279
        $region32: #{tpu_custom_call.1} parent=19 // pred_fallthru
          _
      $region20: #{tpu_custom_call.1} parent=5 // pred_fallthru
        _
      %p294 = scmp.le.s32.totalorder 1, %s25
      %p295 = scmp.lt.s32.totalorder %s25, 3
      %p296 = pnand %p294, %p295
      %p297 = pneg %p296
      // Predicated region
      $region33: #{tpu_custom_call.1} parent=5 // pred_check
        _
      $region34: #{tpu_custom_call.1} parent=5 // pred_check_branch
        %299 = sbr.rel (%p296) target = $region36
      $region35: #{tpu_custom_call.1} parent=5 // pred_region
        %s300 = ssub.s32 %s25, 1
        // Predicated region
        $region37: #{tpu_custom_call.1} parent=35 // pred_check
          %p301 = pneg %p63
        $region38: #{tpu_custom_call.1} parent=35 // pred_check_branch
          %303 = sbr.rel (%p301) target = $region40
        $region39: #{tpu_custom_call.1} parent=35 // pred_region
          %304 = dma.done [#allocation3], 1408
        $region40: #{tpu_custom_call.1} parent=35 // pred_fallthru
          _
        %s305 = sand.u32 %s30, 1
        %s306 = scalar_lea.sflag [#allocation6], %s305
        %s307 = sand.u32 %s78, 1
        %s308 = smul.addr %s307, 8
        %s309 = scalar_lea.vmem [#allocation5], %s308
        // Predicated region
        $region41: #{tpu_custom_call.1} parent=35 // pred_check
          %p310 = pneg %p91
        $region42: #{tpu_custom_call.1} parent=35 // pred_check_branch
          %312 = sbr.rel (%p310) target = $region44
        $region43: #{tpu_custom_call.1} parent=35 // pred_region
          %313 = dma.done %s306, 128
        $region44: #{tpu_custom_call.1} parent=35 // pred_fallthru
          _
        %s314 = sand.u32 %s30, 1
        %s315 = scalar_lea.sflag [#allocation6], %s314
        %s316 = sand.u32 %s106, 1
        %s317 = smul.addr %s316, 8
        %s318 = scalar_lea.vmem [#allocation7], %s317
        // Predicated region
        $region45: #{tpu_custom_call.1} parent=35 // pred_check
          %p319 = pneg %p119
        $region46: #{tpu_custom_call.1} parent=35 // pred_check_branch
          %321 = sbr.rel (%p319) target = $region48
        $region47: #{tpu_custom_call.1} parent=35 // pred_region
          %322 = dma.done %s315, 128
        $region48: #{tpu_custom_call.1} parent=35 // pred_fallthru
          _
        %s323 = sand.u32 %s134, 1
        %s324 = scalar_lea.sflag [#allocation9], %s323
        %s325 = sand.u32 %s134, 1
        %s326 = smul.addr %s325, 8
        %s327 = scalar_lea.vmem [#allocation8], %s326
        // Predicated region
        $region49: #{tpu_custom_call.1} parent=35 // pred_check
          %p328 = pneg %p147
        $region50: #{tpu_custom_call.1} parent=35 // pred_check_branch
          %330 = sbr.rel (%p328) target = $region52
        $region51: #{tpu_custom_call.1} parent=35 // pred_region
          %331 = dma.done %s324, 128
        $region52: #{tpu_custom_call.1} parent=35 // pred_fallthru
          _
        %p332 = pneg %p63
        %p333 = pneg %p60
        %s334 = sand.u32 %s30, 1
        %s335 = scalar_lea.sflag [#allocation6], %s334
        %s336 = sand.u32 %s78, 1
        %s337 = smul.addr %s336, 8
        %s338 = scalar_lea.vmem [#allocation5], %s337
        %p339 = pneg %p91
        %p340 = pneg %p88
        %s341 = sand.u32 %s30, 1
        %s342 = scalar_lea.sflag [#allocation6], %s341
        %s343 = sand.u32 %s106, 1
        %s344 = smul.addr %s343, 8
        %s345 = scalar_lea.vmem [#allocation7], %s344
        %p346 = pneg %p119
        %p347 = pneg %p116
        %s348 = sand.u32 %s134, 1
        %s349 = scalar_lea.sflag [#allocation9], %s348
        %s350 = sand.u32 %s134, 1
        %s351 = smul.addr %s350, 8
        %s352 = scalar_lea.vmem [#allocation8], %s351
        %p353 = pneg %p147
        %p354 = pneg %p144
        %p355 = pneg %p175
        %p356 = pneg %p172
        %s357 = sand.u32 %s162, 1
        %s358 = scalar_lea.sflag [#allocation4], %s357
        %s359 = sand.u32 %s162, 1
        %s360 = smul.addr %s359, 8
        %s361 = scalar_lea.vmem [#allocation10], %s360
        %p362 = pneg %p203
        %p363 = pneg %p200
        %s364 = sand.u32 %s190, 1
        %s365 = scalar_lea.sflag [#allocation12], %s364
        %s366 = sand.u32 %s190, 1
        %s367 = smul.addr %s366, 8
        %s368 = scalar_lea.vmem [#allocation11], %s367
        %v369 = vld [vmem:[%s309] sm:$0xff]
        %v370 = vld [vmem:[%s318] sm:$0xff]
        %v371 = vld [vmem:[%s327] sm:$0xff]
        %v372 = vld [vmem:[#allocation2] sm:$0xff]
        %s373 = scalar_lea.vmem [#allocation2], 8
        %v374 = vld [vmem:[%s373] sm:$0xff]
        %s375 = scalar_lea.vmem [#allocation2], 16
        %v376 = vld [vmem:[%s375] sm:$0xff]
        %s377 = scalar_lea.vmem [#allocation2], 24
        %v378 = vld [vmem:[%s377] sm:$0xff]
        %s379 = scalar_lea.vmem [#allocation2], 32
        %v380 = vld [vmem:[%s379] sm:$0xff]
        %s381 = scalar_lea.vmem [#allocation2], 40
        %v382 = vld [vmem:[%s381] sm:$0xff]
        %s383 = scalar_lea.vmem [#allocation2], 48
        %v384 = vld [vmem:[%s383] sm:$0xff]
        %s385 = scalar_lea.vmem [#allocation2], 56
        %v386 = vld [vmem:[%s385] sm:$0xff]
        %s387 = scalar_lea.vmem [#allocation2], 64
        %v388 = vld [vmem:[%s387] sm:$0xff]
        %s389 = scalar_lea.vmem [#allocation2], 72
        %v390 = vld [vmem:[%s389] sm:$0xff]
        %s391 = scalar_lea.vmem [#allocation2], 80
        %v392 = vld [vmem:[%s391] sm:$0xff]
        %v393 = vmul.f32 %v372, %v369
        %v394 = vmul.f32 %v374, %v370
        %v395 = vadd.f32 %v393, %v394
        %v396 = vmul.f32 %v371, %v388
        %v397 = vadd.f32 %v395, %v396
        %v398 = vmul.f32 %v397, 0.5
        %v399 = vtanh.pop %v398
        %v400 = vmul.f32 %v399, 0.5
        %v401 = vadd.f32 %v400, 0.5
        %v402 = vmul.f32 %v376, %v369
        %v403 = vmul.f32 %v378, %v370
        %v404 = vadd.f32 %v402, %v403
        %v405 = vmul.f32 %v371, %v390
        %v406 = vadd.f32 %v404, %v405
        %v407 = vmul.f32 %v406, 0.5
        %v408 = vtanh.pop %v407
        %v409 = vmul.f32 %v408, 0.5
        %v410 = vadd.f32 %v409, 0.5
        %v411 = vmul.f32 %v410, %v371
        %v412 = vmul.f32 %v380, %v369
        %v413 = vmul.f32 %v382, %v370
        %v414 = vadd.f32 %v412, %v413
        %v415 = vtanh.pop %v414
        %v416 = vmul.f32 %v401, %v415
        %v417 = vadd.f32 %v411, %v416
        %v418 = vmul.f32 %v384, %v369
        %v419 = vmul.f32 %v386, %v370
        %v420 = vadd.f32 %v418, %v419
        %v421 = vmul.f32 %v417, %v392
        %v422 = vadd.f32 %v420, %v421
        %v423 = vmul.f32 %v422, 0.5
        %v424 = vtanh.pop %v423
        %v425 = vmul.f32 %v424, 0.5
        %v426 = vadd.f32 %v425, 0.5
        %v427 = vtanh.pop %v417
        %v428 = vmul.f32 %v426, %v427
        %429 = vst [vmem:[%s361] sm:$0xff] %v428
        %430 = vst [vmem:[%s368] sm:$0xff] %v417
        %s431 = sand.u32 %s162, 1
        %s432 = scalar_lea.sflag [#allocation4], %s431
        %s433 = sand.u32 %s162, 1
        %s434 = smul.addr %s433, 8
        %s435 = scalar_lea.vmem [#allocation10], %s434
        %s436 = sand.u32 %s190, 1
        %s437 = scalar_lea.sflag [#allocation12], %s436
        %s438 = sand.u32 %s190, 1
        %s439 = smul.addr %s438, 8
        %s440 = scalar_lea.vmem [#allocation11], %s439
        // Predicated region
        $region53: #{tpu_custom_call.1} parent=35 // pred_check
          %p441 = pneg %p172
        $region54: #{tpu_custom_call.1} parent=35 // pred_check_branch
          %443 = sbr.rel (%p441) target = $region56
        $region55: #{tpu_custom_call.1} parent=35 // pred_region
          %s445 = ssub.s32 128, 128
          %446 = vsyncadd %s432, %s445
          %s447 = sadd.s32 %s34, %s35
          %s448 = smul.addr %s447, 128
          %s449 = scalar_lea.hbm %s4, %s448
          %s451 = sshll.u32 %s435, 4
          %s452 = int_to_ptr.vmem [resolvable:$true] %s451
          %454 = dma.vmem_to_hbm [thread:$0]  %s452, 128, %s449, %s432
        $region56: #{tpu_custom_call.1} parent=35 // pred_fallthru
          _
        // Predicated region
        $region57: #{tpu_custom_call.1} parent=35 // pred_check
          %p455 = pneg %p200
        $region58: #{tpu_custom_call.1} parent=35 // pred_check_branch
          %457 = sbr.rel (%p455) target = $region60
        $region59: #{tpu_custom_call.1} parent=35 // pred_region
          %s459 = ssub.s32 128, 128
          %460 = vsyncadd %s437, %s459
          %s461 = sadd.s32 %s34, %s35
          %s462 = smul.addr %s461, 128
          %s463 = scalar_lea.hbm %s5, %s462
          %s465 = sshll.u32 %s440, 4
          %s466 = int_to_ptr.vmem [resolvable:$true] %s465
          %468 = dma.vmem_to_hbm [thread:$0]  %s466, 128, %s463, %s437
        $region60: #{tpu_custom_call.1} parent=35 // pred_fallthru
          _
      $region36: #{tpu_custom_call.1} parent=5 // pred_fallthru
        _
      %p469 = scmp.le.s32.totalorder 2, %s25
      // Predicated region
      $region61: #{tpu_custom_call.1} parent=5 // pred_check
        %p470 = pneg %p469
      $region62: #{tpu_custom_call.1} parent=5 // pred_check_branch
        %472 = sbr.rel (%p470) target = $region64
      $region63: #{tpu_custom_call.1} parent=5 // pred_region
        %s473 = ssub.s32 %s25, 2
        // Predicated region
        $region65: #{tpu_custom_call.1} parent=63 // pred_check
          %p474 = pneg %p178
        $region66: #{tpu_custom_call.1} parent=63 // pred_check_branch
          %476 = sbr.rel (%p474) target = $region68
        $region67: #{tpu_custom_call.1} parent=63 // pred_region
          %s477 = sand.u32 %s163, 1
          %s478 = scalar_lea.sflag [#allocation4], %s477
          %s479 = sand.u32 %s163, 1
          %s480 = smul.addr %s479, 8
          %s481 = scalar_lea.vmem [#allocation10], %s480
          %482 = dma.done %s478, 128
        $region68: #{tpu_custom_call.1} parent=63 // pred_fallthru
          _
        // Predicated region
        $region69: #{tpu_custom_call.1} parent=63 // pred_check
          %p483 = pneg %p206
        $region70: #{tpu_custom_call.1} parent=63 // pred_check_branch
          %485 = sbr.rel (%p483) target = $region72
        $region71: #{tpu_custom_call.1} parent=63 // pred_region
          %s486 = sand.u32 %s191, 1
          %s487 = scalar_lea.sflag [#allocation12], %s486
          %s488 = sand.u32 %s191, 1
          %s489 = smul.addr %s488, 8
          %s490 = scalar_lea.vmem [#allocation11], %s489
          %491 = dma.done %s487, 128
        $region72: #{tpu_custom_call.1} parent=63 // pred_fallthru
          _
      $region64: #{tpu_custom_call.1} parent=5 // pred_fallthru
        _
    $region6: #{tpu_custom_call.1} parent=1 // loop_footer
      %s29 = sadd.s32 1, %s25
    $region7: #{tpu_custom_call.1} parent=1 // loop_footer_branch
      %24 = sbr.rel target = $region3
    $region8: #{tpu_custom_call.1} parent=1 // loop_exit
      _
    %492 = vsyncpa [#allocation3], 1
    %s493 = scalar_lea.sflag [#allocation3], 1
    %494 = vsyncpa %s493, 1
    %495 = vsyncpa [#allocation6], 1
    %s496 = scalar_lea.sflag [#allocation6], 1
    %497 = vsyncpa %s496, 1
    %498 = vsyncpa [#allocation9], 1
    %s499 = scalar_lea.sflag [#allocation9], 1
    %500 = vsyncpa %s499, 1
    %501 = vsyncpa [#allocation4], 1
    %s502 = scalar_lea.sflag [#allocation4], 1
    %503 = vsyncpa %s502, 1
    %504 = vsyncpa [#allocation12], 1
    %s505 = scalar_lea.sflag [#allocation12], 1
    %506 = vsyncpa %s505, 1

</llo_original>
